<compile_context>
chip_gen: v7x
topology: tpu7x:2x2x1
jax: 0.10.0
libtpu: 0.0.40
codegen_flags: <defaults>
</compile_context>

<pallas_src>
import functools
import math

import jax
import jax.numpy as jnp
from jax import lax
from jax.experimental import pallas as pl
from jax.experimental.pallas import tpu as pltpu

EPS = 1e-5  # nn.InstanceNorm2d default


def _encoder_kernel(ev_ref, od_ref, w_ref, o_ref, *, wo: int):
    # ev_ref: (1, 3*C_in, (Ho+1)*Wo) bf16 -- even output-row phases, 3 col taps
    # od_ref: (1, 3*C_in, Ho*Wo)     bf16 -- odd  output-row phases, 3 col taps
    # w_ref:  (3, TC, 3*C_in)        bf16 -- one (TC, 3*C_in) slab per kernel row
    # o_ref:  (1, TC, Ho*Wo)         out_dtype
    P = o_ref.shape[-1]
    ev = ev_ref[0]                                        # (3*C_in, (Ho+1)*Wo)
    od = od_ref[0]                                        # (3*C_in, Ho*Wo)

    # Conv as 3 lane-dense matmuls (kernel rows kh = 0, 1, 2), f32 accumulation.
    # Row kh=2 is the even-row phase shifted by one output row == a contiguous
    # lane slice at offset Wo of the flattened (rows, Wo) layout.
    y = jnp.dot(w_ref[0], ev[:, :P], preferred_element_type=jnp.float32)
    y += jnp.dot(w_ref[1], od, preferred_element_type=jnp.float32)
    y += jnp.dot(w_ref[2], ev[:, wo:wo + P], preferred_element_type=jnp.float32)

    # InstanceNorm2d (affine=False), one-pass stats over the spatial (lane)
    # axis: var = E[y^2] - mean^2, clamped at 0 to guard cancellation.
    # Conv bias is intentionally omitted: it cancels exactly in (y - mean).
    inv_p = 1.0 / P
    s1 = jnp.sum(y, axis=1, keepdims=True)                # (TC, 1)
    s2 = jnp.sum(y * y, axis=1, keepdims=True)            # (TC, 1)
    mean = s1 * inv_p
    var = jnp.maximum(s2 * inv_p - mean * mean, 0.0)
    yn = (y - mean) * lax.rsqrt(var + EPS)

    # SiLU
    o_ref[0] = (yn * jax.nn.sigmoid(yn)).astype(o_ref.dtype)


@functools.partial(jax.jit, static_argnames=("out_dtype",))
def encoder_forward(x_nchw, weight, bias, *, out_dtype=jnp.float32):
    """x_nchw: (N, C_in, H, W); weight: (C_out, C_in, 3, 3); bias: (C_out,).

    `bias` is accepted for API parity with nn.Conv2d but unused: the following
    no-affine InstanceNorm cancels any per-channel additive constant exactly.
    """
    del bias
    N, C_in, H, W = x_nchw.shape
    C_out = weight.shape[0]
    Ho = (H + 2 - 3) // 2 + 1
    Wo = (W + 2 - 3) // 2 + 1
    P = Ho * Wo
    Pe = (Ho + 1) * Wo
    K = 3 * C_in

    # bf16 operands (halves HBM traffic, doubles MXU rate); accumulation is f32.
    x_bf16 = x_nchw.astype(jnp.bfloat16)
    xp = jnp.pad(x_bf16, ((0, 0), (0, 0), (1, 1), (1, 1)))          # (N,C,H+2,W+2)

    # Fused-im2col front end: stride-2 phase decomposition.
    #   column tap d (kw=d): padded cols d, d+2, ...      -> (N, C, H+2, Wo)
    #   even output-row phase (kh=0 at row offset 0, kh=2 at offset 1)
    #   odd  output-row phase (kh=1)
    # Total HBM bytes ~1.5x the bf16 input, vs 9x for an im2col patch tensor.
    col_taps = jnp.stack([xp[:, :, :, d:d + 2 * Wo:2] for d in range(3)], axis=1)
    evens = col_taps[:, :, :, 0:2 * Ho + 1:2, :].reshape(N, K, Pe)  # rows 0,2,..,2Ho
    odds = col_taps[:, :, :, 1:2 * Ho:2, :].reshape(N, K, P)        # rows 1,3,..,2Ho-1

    # Weight: one (C_out, 3*C_in) slab per kernel row kh, columns ordered
    # (kw, ci) to match the phase-tensor row ordering.
    w_r = jnp.transpose(weight, (2, 0, 3, 1)).reshape(3, C_out, K).astype(jnp.bfloat16)

    # C_out tiling: independent per-channel InstanceNorm => embarrassingly
    # parallel second grid axis (keeps both v7x TensorCores busy when N == 1).
    tc = 128 if (C_out > 128 and C_out % 128 == 0) else C_out
    n_ct = C_out // tc

    # VMEM budget: double-buffered blocks, 48 MiB cap (v7x-safe), explicit limit.
    out_itemsize = jnp.dtype(out_dtype).itemsize
    block_bytes = (K * Pe + K * P) * 2 + 3 * tc * K * 2 + tc * P * out_itemsize
    resident = 2 * block_bytes
    if resident > 48 * 2**20:
        # TODO(synk): spatial (P) tiling with two-phase streaming stats.
        raise ValueError(
            f"per-step VMEM footprint {resident / 2**20:.1f} MiB exceeds the "
            "48 MiB budget; spatial tiling not implemented for this size")
    vmem_limit = int(min(max(resident * 2 + (4 << 20), 32 << 20), 60 << 20))

    cost = pl.CostEstimate(
        flops=2 * N * C_out * (9 * C_in) * P,
        transcendentals=2 * N * C_out * P,  # sigmoid + rsqrt
        bytes_accessed=(evens.size + odds.size + w_r.size) * 2
        + N * C_out * P * out_itemsize,
    )

    kernel = functools.partial(_encoder_kernel, wo=Wo)

    out = pl.pallas_call(
        kernel,
        out_shape=jax.ShapeDtypeStruct((N, C_out, P), out_dtype),
        grid_spec=pltpu.PrefetchScalarGridSpec(
            num_scalar_prefetch=0,
            grid=(N, n_ct),
            in_specs=[
                pl.BlockSpec((1, K, Pe), lambda n, c: (n, 0, 0)),
                pl.BlockSpec((1, K, P), lambda n, c: (n, 0, 0)),
                pl.BlockSpec((3, tc, K), lambda n, c: (0, c, 0)),
            ],
            out_specs=pl.BlockSpec((1, tc, P), lambda n, c: (n, c, 0)),
        ),
        compiler_params=pltpu.CompilerParams(
            dimension_semantics=("parallel", "parallel"),
            vmem_limit_bytes=vmem_limit),
        cost_estimate=cost,
    )(evens, odds, w_r)

    # (N, C_out, P) is channel-major: a plain reshape gives NCHW.
    return out.reshape(N, C_out, Ho, Wo)


def _reference_forward(x_nchw, weight, bias):
    """Pure-JAX reference (conv -> instance norm -> SiLU), NCHW.

    Uses the same bf16-rounded operands the kernel sees (f32 accumulation) so
    the comparison isolates kernel correctness, and includes the conv bias to
    demonstrate that dropping it in the kernel is exact.
    """
    xf = x_nchw.astype(jnp.bfloat16).astype(jnp.float32)
    wf = weight.astype(jnp.bfloat16).astype(jnp.float32)
    y = lax.conv_general_dilated(
        xf, wf, window_strides=(2, 2), padding=((1, 1), (1, 1)),
        dimension_numbers=("NCHW", "OIHW", "NCHW"),
        precision=lax.Precision.HIGHEST)
    y = y + bias.reshape(1, -1, 1, 1).astype(jnp.float32)
    mean = jnp.mean(y, axis=(2, 3), keepdims=True)
    var = jnp.mean((y - mean) ** 2, axis=(2, 3), keepdims=True)
    yn = (y - mean) * lax.rsqrt(var + EPS)
    return yn * jax.nn.sigmoid(yn)


if __name__ == "__main__":
    # Small shapes consistent with the module's forward.
    N, C_in, H, W = 2, 4, 16, 16
    C_out = 8

    key = jax.random.PRNGKey(0)
    kx, kw, kb = jax.random.split(key, 3)

    x = jax.random.normal(kx, (N, C_in, H, W), dtype=jnp.float32)
    fan_in = C_in * 3 * 3
    weight = jax.random.normal(kw, (C_out, C_in, 3, 3), dtype=jnp.float32) / math.sqrt(fan_in)
    bias = jax.random.normal(kb, (C_out,), dtype=jnp.float32) * 0.1

    out = jax.block_until_ready(encoder_forward(x, weight, bias))
    ref = _reference_forward(x, weight, bias)

    assert out.shape == (N, C_out, H // 2, W // 2), out.shape
    err = float(jnp.max(jnp.abs(out - ref)))
    assert err < 2e-3, f"max abs err {err}"

    print("KERNEL_OK")
</pallas_src>

<mosaic_0001>
module attributes {stable_mosaic.version = 11 : i64} {
  func.func @_encoder_kernel(%arg0: i32, %arg1: i32, %arg2: memref<1x12x72xbf16, #tpu.memory_space<vmem>>, %arg3: memref<1x12x64xbf16, #tpu.memory_space<vmem>>, %arg4: memref<3x8x12xbf16, #tpu.memory_space<vmem>>, %arg5: memref<1x8x64xf32, #tpu.memory_space<vmem>>) attributes {dimension_semantics = [#tpu.dimension_semantics<parallel>, #tpu.dimension_semantics<parallel>], iteration_bounds = array<i64: 2, 1>, scalar_prefetch = 0 : i64, scratch_operands = 0 : i64, tpu.core_type = #tpu.core_type<tc>, window_params = [{transform_indices = @transform_0, window_bounds = array<i64: 1, 12, 72>}, {transform_indices = @transform_1, window_bounds = array<i64: 1, 12, 64>}, {transform_indices = @transform_2, window_bounds = array<i64: 3, 8, 12>}, {transform_indices = @transform_3, window_bounds = array<i64: 1, 8, 64>}]} {
    %c0 = arith.constant 0 : index
    %c0_0 = arith.constant 0 : index
    %c0_1 = arith.constant 0 : index
    %0 = vector.load %arg2[%c0, %c0_0, %c0_1] : memref<1x12x72xbf16, #tpu.memory_space<vmem>>, vector<1x12x72xbf16>
    %1 = vector.shape_cast %0 : vector<1x12x72xbf16> to vector<12x72xbf16>
    %c0_2 = arith.constant 0 : index
    %c0_3 = arith.constant 0 : index
    %c0_4 = arith.constant 0 : index
    %2 = vector.load %arg3[%c0_2, %c0_3, %c0_4] : memref<1x12x64xbf16, #tpu.memory_space<vmem>>, vector<1x12x64xbf16>
    %3 = vector.shape_cast %2 : vector<1x12x64xbf16> to vector<12x64xbf16>
    %c0_5 = arith.constant 0 : index
    %c0_6 = arith.constant 0 : index
    %c0_7 = arith.constant 0 : index
    %4 = vector.load %arg4[%c0_5, %c0_6, %c0_7] : memref<3x8x12xbf16, #tpu.memory_space<vmem>>, vector<1x8x12xbf16>
    %5 = vector.shape_cast %4 : vector<1x8x12xbf16> to vector<8x12xbf16>
    %6 = vector.extract_strided_slice %1 {offsets = [0, 0], sizes = [12, 64], strides = [1, 1]} : vector<12x72xbf16> to vector<12x64xbf16>
    %cst = arith.constant dense<0.000000e+00> : vector<8x64xf32>
    %7 = tpu.matmul %5, %6, %cst {dimension_numbers = #tpu.dot_dimension_numbers<[1], [0], [0], [1], [0, 0, 1, 1], [], []>} : vector<8x12xbf16>, vector<12x64xbf16>, vector<8x64xf32> -> vector<8x64xf32>
    %c1 = arith.constant 1 : index
    %c0_8 = arith.constant 0 : index
    %c0_9 = arith.constant 0 : index
    %8 = vector.load %arg4[%c1, %c0_8, %c0_9] : memref<3x8x12xbf16, #tpu.memory_space<vmem>>, vector<1x8x12xbf16>
    %9 = vector.shape_cast %8 : vector<1x8x12xbf16> to vector<8x12xbf16>
    %cst_10 = arith.constant dense<0.000000e+00> : vector<8x64xf32>
    %10 = tpu.matmul %9, %3, %cst_10 {dimension_numbers = #tpu.dot_dimension_numbers<[1], [0], [0], [1], [0, 0, 1, 1], [], []>} : vector<8x12xbf16>, vector<12x64xbf16>, vector<8x64xf32> -> vector<8x64xf32>
    %11 = arith.addf %7, %10 : vector<8x64xf32>
    %c2 = arith.constant 2 : index
    %c0_11 = arith.constant 0 : index
    %c0_12 = arith.constant 0 : index
    %12 = vector.load %arg4[%c2, %c0_11, %c0_12] : memref<3x8x12xbf16, #tpu.memory_space<vmem>>, vector<1x8x12xbf16>
    %13 = vector.shape_cast %12 : vector<1x8x12xbf16> to vector<8x12xbf16>
    %14 = vector.extract_strided_slice %1 {offsets = [0, 8], sizes = [12, 64], strides = [1, 1]} : vector<12x72xbf16> to vector<12x64xbf16>
    %cst_13 = arith.constant dense<0.000000e+00> : vector<8x64xf32>
    %15 = tpu.matmul %13, %14, %cst_13 {dimension_numbers = #tpu.dot_dimension_numbers<[1], [0], [0], [1], [0, 0, 1, 1], [], []>} : vector<8x12xbf16>, vector<12x64xbf16>, vector<8x64xf32> -> vector<8x64xf32>
    %16 = arith.addf %11, %15 : vector<8x64xf32>
    %cst_14 = arith.constant dense<0.000000e+00> : vector<8xf32>
    %17 = vector.multi_reduction <add>, %16, %cst_14 [1] : vector<8x64xf32> to vector<8xf32>
    %18 = vector.shape_cast %17 : vector<8xf32> to vector<8x1xf32>
    %19 = arith.mulf %16, %16 : vector<8x64xf32>
    %cst_15 = arith.constant dense<0.000000e+00> : vector<8xf32>
    %20 = vector.multi_reduction <add>, %19, %cst_15 [1] : vector<8x64xf32> to vector<8xf32>
    %21 = vector.shape_cast %20 : vector<8xf32> to vector<8x1xf32>
    %cst_16 = arith.constant 1.562500e-02 : f32
    %22 = vector.broadcast %cst_16 : f32 to vector<8x1xf32>
    %23 = arith.mulf %18, %22 : vector<8x1xf32>
    %cst_17 = arith.constant 1.562500e-02 : f32
    %24 = vector.broadcast %cst_17 : f32 to vector<8x1xf32>
    %25 = arith.mulf %21, %24 : vector<8x1xf32>
    %26 = arith.mulf %23, %23 : vector<8x1xf32>
    %27 = arith.subf %25, %26 : vector<8x1xf32>
    %cst_18 = arith.constant 0.000000e+00 : f32
    %28 = vector.broadcast %cst_18 : f32 to vector<8x1xf32>
    %29 = arith.maximumf %27, %28 : vector<8x1xf32>
    %30 = vector.broadcast %23 : vector<8x1xf32> to vector<8x64xf32>
    %31 = arith.subf %16, %30 : vector<8x64xf32>
    %cst_19 = arith.constant 9.99999974E-6 : f32
    %32 = vector.broadcast %cst_19 : f32 to vector<8x1xf32>
    %33 = arith.addf %29, %32 : vector<8x1xf32>
    %34 = math.rsqrt %33 : vector<8x1xf32>
    %35 = vector.broadcast %34 : vector<8x1xf32> to vector<8x64xf32>
    %36 = arith.mulf %31, %35 : vector<8x64xf32>
    %37 = arith.negf %36 : vector<8x64xf32>
    %38 = math.exp %37 : vector<8x64xf32>
    %cst_20 = arith.constant 1.000000e+00 : f32
    %39 = vector.broadcast %cst_20 : f32 to vector<8x64xf32>
    %40 = arith.addf %39, %38 : vector<8x64xf32>
    %41 = arith.divf %39, %40 : vector<8x64xf32>
    %42 = arith.mulf %36, %41 : vector<8x64xf32>
    %c0_21 = arith.constant 0 : index
    %c0_22 = arith.constant 0 : index
    %c0_23 = arith.constant 0 : index
    %43 = vector.load %arg5[%c0_21, %c0_22, %c0_23] : memref<1x8x64xf32, #tpu.memory_space<vmem>>, vector<1x8x64xf32>
    %44 = vector.shape_cast %43 : vector<1x8x64xf32> to vector<8x64xf32>
    %45 = vector.shape_cast %42 : vector<8x64xf32> to vector<1x8x64xf32>
    tpu.vector_store %arg5[%c0_21, %c0_22, %c0_23], %45 {strides = array<i32>} : memref<1x8x64xf32, #tpu.memory_space<vmem>>, vector<1x8x64xf32>,
    return
  }
  func.func @transform_0(%arg0: i32, %arg1: i32) -> (i32, i32, i32) {
    %c0_i32 = arith.constant 0 : i32
    %c0_i32_0 = arith.constant 0 : i32
    %c0_i32_1 = arith.constant 0 : i32
    return %arg0, %c0_i32, %c0_i32_0 : i32, i32, i32
  }
  func.func @transform_1(%arg0: i32, %arg1: i32) -> (i32, i32, i32) {
    %c0_i32 = arith.constant 0 : i32
    %c0_i32_0 = arith.constant 0 : i32
    %c0_i32_1 = arith.constant 0 : i32
    return %arg0, %c0_i32, %c0_i32_0 : i32, i32, i32
  }
  func.func @transform_2(%arg0: i32, %arg1: i32) -> (i32, i32, i32) {
    %c0_i32 = arith.constant 0 : i32
    %c0_i32_0 = arith.constant 0 : i32
    %c0_i32_1 = arith.constant 0 : i32
    return %c0_i32, %arg1, %c0_i32_0 : i32, i32, i32
  }
  func.func @transform_3(%arg0: i32, %arg1: i32) -> (i32, i32, i32) {
    %c0_i32 = arith.constant 0 : i32
    %c0_i32_0 = arith.constant 0 : i32
    return %arg0, %arg1, %c0_i32 : i32, i32, i32
  }
}

</mosaic_0001>

<llo_original>
// kernel: encoder_forward.1
$region0: #{encoder_forward.1}
  #allocation0 [shape = 'u32[]', space=smem, size = 0x4, offset = 0x4, fixed_abs, tag = 'smem constant byte address 0x4 - core index']
  #allocation1 [shape = 'u32[144,128]{1,0:T(1,128)}', space=vmem, size = 0x12000, scoped, tag = 'internal scratch']
  %s0 = inlined_call_operand.vmem [shape: bf16[2,12,72], index: 0, kind: input, shape index: {}]
  %s1 = inlined_call_operand.vmem [shape: bf16[2,12,64], index: 1, kind: input, shape index: {}]
  %s2 = inlined_call_operand.vmem [shape: bf16[3,8,12], index: 2, kind: input, shape index: {}]
  %s3 = inlined_call_operand.vmem [shape: f32[2,8,64], index: 3, kind: output, shape index: {}]
  %s4 = sld [smem:[#allocation0]]
  $region45: #{encoder_forward.1} parent=0
    _
  %s6 = ssub.s32 1, %s4
  %s7 = scalar_select 0, %s6, %s4
  loop: start=0, step=1, limit=4
  $region2: #{encoder_forward.1} parent=0 // loop_pre_header
    _
  $region3: #{encoder_forward.1} parent=0 // loop_header
    %s9 = sphi 0, %s13
    %p10 = scmp.ge.s32.totalorder %s9, 4
    %s16 = sphi 0, %s28
    %s17 = sphi 0, %s24
    %s18 = sphi 0, %s16
    %s19 = sphi 0, %s17
    %s20 = sphi 0, %s18
    %s21 = sphi 0, %s19
    %s31 = sphi 0, %s33
    %s34 = sphi 0, %s31
    %s35 = sphi 0, %s34
    %s51 = sphi 0, %s35
    %s57 = sphi 0, %s59
    %s60 = sphi 0, %s57
    %s61 = sphi 0, %s60
    %s77 = sphi 0, %s61
    %s83 = sphi 0, %s85
    %s86 = sphi 0, %s83
    %s87 = sphi 0, %s86
    %s103 = sphi 0, %s87
    %s111 = sphi 0, %s113
    %s114 = sphi 0, %s111
    %s115 = sphi 0, %s114
    %s131 = sphi 0, %s115
  $region4: #{encoder_forward.1} parent=0 // loop_header_branch
    %12 = sbr.rel (%p10) target = $region8
  $region5: #{encoder_forward.1} parent=0 // loop_body
    %s14 = ssub.s32 %s9, 1
    %s15 = ssub.s32 %s9, 2
    %s22 = sadd.s32 1, %s17
    %p23 = scmp.ge.s32.totalorder %s22, 1
    %s24 = scalar_select %p23, 0, %s22
    %s25 = sadd.s32 1, %s16
    %s26 = scalar_select %p23, %s25, %s16
    %p27 = scmp.ge.s32.totalorder %s26, 2
    %s28 = scalar_select %p27, 0, %s26
    %s29 = ssub.s32 %s16, %s28
    %p30 = scmp.eq.s32.totalorder %s29, 0
    %s32 = sadd.s32 %s31, 1
    %s33 = scalar_select %p30, %s31, %s32
    %p36 = pneg %p30
    %p37 = scmp.eq.s32.totalorder %s9, 1
    %p38 = por %p36, %p37
    %p39 = scmp.ne.s32.totalorder %s31, %s34
    %p40 = scmp.eq.s32.totalorder %s9, 0
    %p41 = por %p39, %p40
    %p42 = scmp.ne.s32.totalorder %s31, %s34
    %p43 = scmp.eq.s32.totalorder %s14, 1
    %p44 = por %p42, %p43
    %p45 = scmp.ne.s32.totalorder %s34, %s35
    %p46 = scmp.eq.s32.totalorder %s14, 0
    %p47 = por %p45, %p46
    %p48 = scmp.ne.s32.totalorder %s34, %s35
    %p49 = scmp.eq.s32.totalorder %s15, 1
    %p50 = por %p48, %p49
    %p52 = scmp.ne.s32.totalorder %s35, %s51
    %p53 = scmp.eq.s32.totalorder %s15, 0
    %p54 = por %p52, %p53
    %s55 = ssub.s32 %s16, %s28
    %p56 = scmp.eq.s32.totalorder %s55, 0
    %s58 = sadd.s32 %s57, 1
    %s59 = scalar_select %p56, %s57, %s58
    %p62 = pneg %p56
    %p63 = scmp.eq.s32.totalorder %s9, 1
    %p64 = por %p62, %p63
    %p65 = scmp.ne.s32.totalorder %s57, %s60
    %p66 = scmp.eq.s32.totalorder %s9, 0
    %p67 = por %p65, %p66
    %p68 = scmp.ne.s32.totalorder %s57, %s60
    %p69 = scmp.eq.s32.totalorder %s14, 1
    %p70 = por %p68, %p69
    %p71 = scmp.ne.s32.totalorder %s60, %s61
    %p72 = scmp.eq.s32.totalorder %s14, 0
    %p73 = por %p71, %p72
    %p74 = scmp.ne.s32.totalorder %s60, %s61
    %p75 = scmp.eq.s32.totalorder %s15, 1
    %p76 = por %p74, %p75
    %p78 = scmp.ne.s32.totalorder %s61, %s77
    %p79 = scmp.eq.s32.totalorder %s15, 0
    %p80 = por %p78, %p79
    %s81 = ssub.s32 %s17, %s24
    %p82 = scmp.eq.s32.totalorder %s81, 0
    %s84 = sadd.s32 %s83, 1
    %s85 = scalar_select %p82, %s83, %s84
    %p88 = pneg %p82
    %p89 = scmp.eq.s32.totalorder %s9, 1
    %p90 = por %p88, %p89
    %p91 = scmp.ne.s32.totalorder %s83, %s86
    %p92 = scmp.eq.s32.totalorder %s9, 0
    %p93 = por %p91, %p92
    %p94 = scmp.ne.s32.totalorder %s83, %s86
    %p95 = scmp.eq.s32.totalorder %s14, 1
    %p96 = por %p94, %p95
    %p97 = scmp.ne.s32.totalorder %s86, %s87
    %p98 = scmp.eq.s32.totalorder %s14, 0
    %p99 = por %p97, %p98
    %p100 = scmp.ne.s32.totalorder %s86, %s87
    %p101 = scmp.eq.s32.totalorder %s15, 1
    %p102 = por %p100, %p101
    %p104 = scmp.ne.s32.totalorder %s87, %s103
    %p105 = scmp.eq.s32.totalorder %s15, 0
    %p106 = por %p104, %p105
    %s107 = ssub.s32 %s16, %s28
    %s108 = ssub.s32 %s17, %s24
    %s109 = sor.u32 %s107, %s108
    %p110 = scmp.eq.s32.totalorder %s109, 0
    %s112 = sadd.s32 %s111, 1
    %s113 = scalar_select %p110, %s111, %s112
    %p116 = pneg %p110
    %p117 = scmp.eq.s32.totalorder %s9, 1
    %p118 = por %p116, %p117
    %p119 = scmp.ne.s32.totalorder %s111, %s114
    %p120 = scmp.eq.s32.totalorder %s9, 0
    %p121 = por %p119, %p120
    %p122 = scmp.ne.s32.totalorder %s111, %s114
    %p123 = scmp.eq.s32.totalorder %s14, 1
    %p124 = por %p122, %p123
    %p125 = scmp.ne.s32.totalorder %s114, %s115
    %p126 = scmp.eq.s32.totalorder %s14, 0
    %p127 = por %p125, %p126
    %p128 = scmp.ne.s32.totalorder %s114, %s115
    %p129 = scmp.eq.s32.totalorder %s15, 1
    %p130 = por %p128, %p129
    %p132 = scmp.ne.s32.totalorder %s115, %s131
    %p133 = scmp.eq.s32.totalorder %s15, 0
    %p134 = por %p132, %p133
    %p135 = scmp.le.s32.totalorder 1, %s9
    %p136 = scmp.lt.s32.totalorder %s9, 3
    %p137 = pnand %p135, %p136
    %p138 = pneg %p137
    // Predicated region
    $region9: #{encoder_forward.1} parent=5 // pred_check
      _
    $region10: #{encoder_forward.1} parent=5 // pred_check_branch
      %140 = sbr.rel (%p137) target = $region12
    $region11: #{encoder_forward.1} parent=5 // pred_region
      %s141 = ssub.s32 %s9, 1
      // Predicated region
      $region13: #{encoder_forward.1} parent=11 // pred_check
        %p142 = pneg %p99
      $region14: #{encoder_forward.1} parent=11 // pred_check_branch
        %144 = sbr.rel (%p142) target = $region16
      $region15: #{encoder_forward.1} parent=11 // pred_region
        %p145 = scmp.lt.s32.totalorder %s19, 0
        %s146 = scalar_select %p145, %s19, 0
        %s147 = smul.addr %s146, 4
        %s148 = scalar_lea.vmem %s2, %s147
      $region16: #{encoder_forward.1} parent=11 // pred_fallthru
        _
    $region12: #{encoder_forward.1} parent=5 // pred_fallthru
      _
    %p149 = scmp.lt.s32.totalorder %s9, 2
    // Predicated region
    $region17: #{encoder_forward.1} parent=5 // pred_check
      %p150 = pneg %p149
    $region18: #{encoder_forward.1} parent=5 // pred_check_branch
      %152 = sbr.rel (%p150) target = $region20
    $region19: #{encoder_forward.1} parent=5 // pred_region
      // Predicated region
      $region21: #{encoder_forward.1} parent=19 // pred_check
        %p153 = pneg %p41
      $region22: #{encoder_forward.1} parent=19 // pred_check_branch
        %155 = sbr.rel (%p153) target = $region24
      $region23: #{encoder_forward.1} parent=19 // pred_region
        %p156 = scmp.lt.s32.totalorder %s16, 1
        %s157 = scalar_select %p156, %s16, 1
        %s158 = smul.addr %s157, 2
        %s159 = smul.addr %s158, 4
        %s160 = scalar_lea.vmem %s0, %s159
      $region24: #{encoder_forward.1} parent=19 // pred_fallthru
        _
      // Predicated region
      $region25: #{encoder_forward.1} parent=19 // pred_check
        %p161 = pneg %p67
      $region26: #{encoder_forward.1} parent=19 // pred_check_branch
        %163 = sbr.rel (%p161) target = $region28
      $region27: #{encoder_forward.1} parent=19 // pred_region
        %p164 = scmp.lt.s32.totalorder %s16, 1
        %s165 = scalar_select %p164, %s16, 1
        %s166 = smul.addr %s165, 2
        %s167 = smul.addr %s166, 4
        %s168 = scalar_lea.vmem %s1, %s167
      $region28: #{encoder_forward.1} parent=19 // pred_fallthru
        _
    $region20: #{encoder_forward.1} parent=5 // pred_fallthru
      _
    %p169 = scmp.le.s32.totalorder 1, %s9
    %p170 = scmp.lt.s32.totalorder %s9, 3
    %p171 = pnand %p169, %p170
    %p172 = pneg %p171
    // Predicated region
    $region29: #{encoder_forward.1} parent=5 // pred_check
      _
    $region30: #{encoder_forward.1} parent=5 // pred_check_branch
      %174 = sbr.rel (%p171) target = $region32
    $region31: #{encoder_forward.1} parent=5 // pred_region
      %s175 = ssub.s32 %s9, 1
      %p176 = scmp.lt.s32.totalorder %s18, 1
      %s177 = scalar_select %p176, %s18, 1
      %s178 = smul.addr %s177, 2
      %s179 = smul.addr %s178, 4
      %s180 = scalar_lea.vmem %s0, %s179
      %p181 = pneg %p47
      %p182 = pneg %p44
      %p183 = scmp.lt.s32.totalorder %s18, 1
      %s184 = scalar_select %p183, %s18, 1
      %s185 = smul.addr %s184, 2
      %s186 = smul.addr %s185, 4
      %s187 = scalar_lea.vmem %s1, %s186
      %p188 = pneg %p73
      %p189 = pneg %p70
      %p190 = scmp.lt.s32.totalorder %s19, 0
      %s191 = scalar_select %p190, %s19, 0
      %s192 = smul.addr %s191, 4
      %s193 = scalar_lea.vmem %s2, %s192
      %p194 = pneg %p99
      %p195 = pneg %p96
      %p196 = pneg %p127
      %p197 = pneg %p124
      %p198 = scmp.lt.s32.totalorder %s18, 1
      %s199 = scalar_select %p198, %s18, 1
      %p200 = scmp.lt.s32.totalorder %s19, 0
      %s201 = scalar_select %p200, %s19, 0
      %s202 = sadd.s32 %s201, %s199
      %s203 = smul.addr %s202, 8
      %s204 = scalar_lea.vmem %s3, %s203
      %p205 = scmp.lt.s32.totalorder %s18, 1
      %s206 = scalar_select %p205, %s18, 1
      %s207 = smul.addr %s206, 2
      %s208 = smul.addr %s207, 4
      %s209 = scalar_lea.vmem %s0, %s208
      %p210 = scmp.lt.s32.totalorder %s18, 1
      %s211 = scalar_select %p210, %s18, 1
      %s212 = smul.addr %s211, 2
      %s213 = smul.addr %s212, 4
      %s214 = scalar_lea.vmem %s1, %s213
      %p215 = scmp.lt.s32.totalorder %s19, 0
      %s216 = scalar_select %p215, %s19, 0
      %s217 = smul.addr %s216, 4
      %s218 = scalar_lea.vmem %s2, %s217
      %p219 = scmp.lt.s32.totalorder %s18, 1
      %s220 = scalar_select %p219, %s18, 1
      %p221 = scmp.lt.s32.totalorder %s19, 0
      %s222 = scalar_select %p221, %s19, 0
      %s223 = sadd.s32 %s222, %s220
      %s224 = smul.addr %s223, 8
      %s225 = scalar_lea.vmem %s3, %s224
      %v227 = vld [vmem:[%s209] sm:$0xf]
      %v228 = vld [vmem:[%s209 + $0x4] sm:$0x3]
      %v229 = vld [vmem:[%s214] sm:$0xf]
      %v230 = vld [vmem:[%s214 + $0x4] sm:$0x3]
      %v231 = vld [vmem:[%s218] sm:$0xf]
      %s232 = scalar_lea.vmem %s218, 4
      %v233 = vld [vmem:[%s232] sm:$0xf]
      %v236 = vunpack.c.l.b16 %v229
      %v237 = vunpack.c.l.b16 %v230
      %v238 = vpack.c.b16 %v237, %v236
      %vm239 = vcmask 97280
      %v241 = vsel %vm239, %v233, 0
      %vm243 = vcmask 1045504
      %v245 = vsel %vm243, %v238, 0
      %247 = vmatprep.subr.bf16.mxu0 0
      %248 = vmatpush1.bf16.msra.mxu0 %v245
      %249 = vmatprep.subr.bf16.mxu0 0
      %250 = vmatpush1.bf16.msra.mxu0 0
      %251 = vmatprep.subr.bf16.mxu0 0
      %252 = vmatpush1.bf16.msra.mxu0 0
      %253 = vmatprep.subr.bf16.mxu0 0
      %254 = vmatpush1.bf16.msra.mxu0 0
      %255 = vmatprep.subr.bf16.mxu0 0
      %256 = vmatpush1.bf16.msra.mxu0 0
      %257 = vmatprep.subr.bf16.mxu0 0
      %258 = vmatpush1.bf16.msra.mxu0 0
      %259 = vmatprep.subr.bf16.mxu0 0
      %260 = vmatpush1.bf16.msra.mxu0 0
      %261 = vmatprep.subr.bf16.mxu0 0
      %262 = vmatpush1.bf16.msra.mxu0 0
      %263 = vmatprep.subr.bf16.mxu0 0
      %264 = vmatpush1.bf16.msra.mxu0 0
      %265 = vmatprep.subr.bf16.mxu0 0
      %266 = vmatpush1.bf16.msra.mxu0 0
      %267 = vmatprep.subr.bf16.mxu0 0
      %268 = vmatpush1.bf16.msra.mxu0 0
      %269 = vmatprep.subr.bf16.mxu0 0
      %270 = vmatpush1.bf16.msra.mxu0 0
      %271 = vmatprep.subr.bf16.mxu0 0
      %272 = vmatpush1.bf16.msra.mxu0 0
      %273 = vmatprep.subr.bf16.mxu0 0
      %274 = vmatpush1.bf16.msra.mxu0 0
      %275 = vmatprep.subr.bf16.mxu0 0
      %276 = vmatpush1.bf16.msra.mxu0 0
      %277 = vmatprep.subr.bf16.mxu0 0
      %278 = vmatpush1.bf16.msra.mxu0 0
      %279 = vmatprep.mubr.bf16.mxu0 0
      %280 = vmatmul.mubr.bf16.gmra.mrb[0].mxu0 %v241
      %v281 = vpop.f32.mrb[0].mxu0
      %v282 = vadd.f32 0.0, %v281
      %v283 = vpop.f32.mrb[0].mxu0
      %v284 = vpop.f32.mrb[0].mxu0
      %v285 = vpop.f32.mrb[0].mxu0
      %286 = vdwg.mxu0
      %v289 = vunpack.c.l.b16 %v227
      %v290 = vunpack.c.l.b16 %v228
      %v291 = vpack.c.b16 %v290, %v289
      %v293 = vsel %vm239, %v231, 0
      %v296 = vsel %vm243, %v291, 0
      %298 = vmatprep.subr.bf16.mxu0 0
      %299 = vmatpush1.bf16.msra.mxu0 %v296
      %300 = vmatprep.subr.bf16.mxu0 0
      %301 = vmatpush1.bf16.msra.mxu0 0
      %302 = vmatprep.subr.bf16.mxu0 0
      %303 = vmatpush1.bf16.msra.mxu0 0
      %304 = vmatprep.subr.bf16.mxu0 0
      %305 = vmatpush1.bf16.msra.mxu0 0
      %306 = vmatprep.subr.bf16.mxu0 0
      %307 = vmatpush1.bf16.msra.mxu0 0
      %308 = vmatprep.subr.bf16.mxu0 0
      %309 = vmatpush1.bf16.msra.mxu0 0
      %310 = vmatprep.subr.bf16.mxu0 0
      %311 = vmatpush1.bf16.msra.mxu0 0
      %312 = vmatprep.subr.bf16.mxu0 0
      %313 = vmatpush1.bf16.msra.mxu0 0
      %314 = vmatprep.subr.bf16.mxu0 0
      %315 = vmatpush1.bf16.msra.mxu0 0
      %316 = vmatprep.subr.bf16.mxu0 0
      %317 = vmatpush1.bf16.msra.mxu0 0
      %318 = vmatprep.subr.bf16.mxu0 0
      %319 = vmatpush1.bf16.msra.mxu0 0
      %320 = vmatprep.subr.bf16.mxu0 0
      %321 = vmatpush1.bf16.msra.mxu0 0
      %322 = vmatprep.subr.bf16.mxu0 0
      %323 = vmatpush1.bf16.msra.mxu0 0
      %324 = vmatprep.subr.bf16.mxu0 0
      %325 = vmatpush1.bf16.msra.mxu0 0
      %326 = vmatprep.subr.bf16.mxu0 0
      %327 = vmatpush1.bf16.msra.mxu0 0
      %328 = vmatprep.subr.bf16.mxu0 0
      %329 = vmatpush1.bf16.msra.mxu0 0
      %330 = vmatprep.mubr.bf16.mxu0 0
      %331 = vmatmul.mubr.bf16.gmra.mrb[0].mxu0 %v293
      %v332 = vpop.f32.mrb[0].mxu0
      %v333 = vadd.f32 %v282, %v332
      %v334 = vpop.f32.mrb[0].mxu0
      %v335 = vpop.f32.mrb[0].mxu0
      %v336 = vpop.f32.mrb[0].mxu0
      %337 = vdwg.mxu0
      %s338 = scalar_lea.vmem %s218, 8
      %v339 = vld [vmem:[%s338] sm:$0xf]
      %340 = vrot.lane.b32.xlu0 %v291, 120
      %v341 = vpop.permute.xlu0 %340
      %v343 = vsel %vm239, %v339, 0
      %v346 = vsel %vm243, %v341, 0
      %348 = vmatprep.subr.bf16.mxu0 0
      %349 = vmatpush1.bf16.msra.mxu0 %v346
      %350 = vmatprep.subr.bf16.mxu0 0
      %351 = vmatpush1.bf16.msra.mxu0 0
      %352 = vmatprep.subr.bf16.mxu0 0
      %353 = vmatpush1.bf16.msra.mxu0 0
      %354 = vmatprep.subr.bf16.mxu0 0
      %355 = vmatpush1.bf16.msra.mxu0 0
      %356 = vmatprep.subr.bf16.mxu0 0
      %357 = vmatpush1.bf16.msra.mxu0 0
      %358 = vmatprep.subr.bf16.mxu0 0
      %359 = vmatpush1.bf16.msra.mxu0 0
      %360 = vmatprep.subr.bf16.mxu0 0
      %361 = vmatpush1.bf16.msra.mxu0 0
      %362 = vmatprep.subr.bf16.mxu0 0
      %363 = vmatpush1.bf16.msra.mxu0 0
      %364 = vmatprep.subr.bf16.mxu0 0
      %365 = vmatpush1.bf16.msra.mxu0 0
      %366 = vmatprep.subr.bf16.mxu0 0
      %367 = vmatpush1.bf16.msra.mxu0 0
      %368 = vmatprep.subr.bf16.mxu0 0
      %369 = vmatpush1.bf16.msra.mxu0 0
      %370 = vmatprep.subr.bf16.mxu0 0
      %371 = vmatpush1.bf16.msra.mxu0 0
      %372 = vmatprep.subr.bf16.mxu0 0
      %373 = vmatpush1.bf16.msra.mxu0 0
      %374 = vmatprep.subr.bf16.mxu0 0
      %375 = vmatpush1.bf16.msra.mxu0 0
      %376 = vmatprep.subr.bf16.mxu0 0
      %377 = vmatpush1.bf16.msra.mxu0 0
      %378 = vmatprep.subr.bf16.mxu0 0
      %379 = vmatpush1.bf16.msra.mxu0 0
      %380 = vmatprep.mubr.bf16.mxu0 0
      %381 = vmatmul.mubr.bf16.gmra.mrb[0].mxu0 %v343
      %v382 = vpop.f32.mrb[0].mxu0
      %v383 = vadd.f32 0.0, %v382
      %v384 = vpop.f32.mrb[0].mxu0
      %v385 = vpop.f32.mrb[0].mxu0
      %v386 = vpop.f32.mrb[0].mxu0
      %387 = vdwg.mxu0
      %v388 = vadd.f32 %v333, %v383
      %vm389 = vcmask 523264
      %v390 = vsel %vm389, %v388, 0.0
      %391 = vadd.xlane.f32.xlu0 %v390
      %v392 = vpop.xlane.xlu0 %391
      %v393 = vmul.f32 %v388, %v388
      %v394 = vsel %vm389, %v393, 0.0
      %395 = vadd.xlane.f32.xlu0 %v394
      %v396 = vpop.xlane.xlu0 %395
      %v397 = vmul.f32 %v392, 0.015625
      %v398 = vmul.f32 %v396, 0.015625
      %v399 = vmul.f32 %v397, %v397
      %v400 = vsub.f32 %v398, %v399
      %v401 = vmax.f32 %v400, 0.0
      %v402 = vsub.f32 %v388, %v397
      %v403 = vadd.f32 %v401, 1e-05
      %v404 = vrsqrt.pop %v403
      %v405 = vmul.f32 %v402, %v404
      %v406 = vxor.u32 %v405, 2147483648
      %v407 = vmul.f32 %v406, 1.442695
      %v408 = vpow.pop %v407
      %v409 = vadd.f32 %v408, 1.0
      %v410 = vrcp.pop %v409
      %v411 = vmul.f32 1.0, %v410
      %v412 = vmul.f32 %v405, %v411
      %413 = vst.msk [vmem:[%s225] sm:$0xff] %vm389, %v412
      %p414 = scmp.lt.s32.totalorder %s18, 1
      %s415 = scalar_select %p414, %s18, 1
      %p416 = scmp.lt.s32.totalorder %s19, 0
      %s417 = scalar_select %p416, %s19, 0
      %s418 = sadd.s32 %s417, %s415
      %s419 = smul.addr %s418, 8
      %s420 = scalar_lea.vmem %s3, %s419
      // Predicated region
      $region33: #{encoder_forward.1} parent=31 // pred_check
        %p421 = pneg %p124
      $region34: #{encoder_forward.1} parent=31 // pred_check_branch
        %423 = sbr.rel (%p421) target = $region36
      $region35: #{encoder_forward.1} parent=31 // pred_region
        _
      $region36: #{encoder_forward.1} parent=31 // pred_fallthru
        _
    $region32: #{encoder_forward.1} parent=5 // pred_fallthru
      _
    %p424 = scmp.le.s32.totalorder 2, %s9
    // Predicated region
    $region37: #{encoder_forward.1} parent=5 // pred_check
      %p425 = pneg %p424
    $region38: #{encoder_forward.1} parent=5 // pred_check_branch
      %427 = sbr.rel (%p425) target = $region40
    $region39: #{encoder_forward.1} parent=5 // pred_region
      %s428 = ssub.s32 %s9, 2
      // Predicated region
      $region41: #{encoder_forward.1} parent=39 // pred_check
        %p429 = pneg %p130
      $region42: #{encoder_forward.1} parent=39 // pred_check_branch
        %431 = sbr.rel (%p429) target = $region44
      $region43: #{encoder_forward.1} parent=39 // pred_region
        %p432 = scmp.lt.s32.totalorder %s20, 1
        %s433 = scalar_select %p432, %s20, 1
        %p434 = scmp.lt.s32.totalorder %s21, 0
        %s435 = scalar_select %p434, %s21, 0
        %s436 = sadd.s32 %s435, %s433
        %s437 = smul.addr %s436, 8
        %s438 = scalar_lea.vmem %s3, %s437
      $region44: #{encoder_forward.1} parent=39 // pred_fallthru
        _
    $region40: #{encoder_forward.1} parent=5 // pred_fallthru
      _
  $region6: #{encoder_forward.1} parent=0 // loop_footer
    %s13 = sadd.s32 1, %s9
  $region7: #{encoder_forward.1} parent=0 // loop_footer_branch
    %8 = sbr.rel target = $region3
  $region8: #{encoder_forward.1} parent=0 // loop_exit
    _

</llo_original>
